<compile_context>
chip_gen: v5e
topology: v5e:2x2
jax: 0.10.0
libtpu: 0.0.40
codegen_flags: <defaults>
</compile_context>

<pallas_src>
from typing import NamedTuple

import jax
import jax.numpy as jnp
from jax.experimental import pallas as pl
from jax.experimental.pallas import tpu as pltpu


def _round_up(n, m):
    return ((n + m - 1) // m) * m


def _head_kernel(x_ref, w1_ref, b1_ref, w2_ref, b2_ref, o_ref):
    # x tile: (TB, D_in) f32 streamed from HBM; cast to bf16 in-kernel so the
    # wrapper never writes a padded bf16 copy of x back to HBM.
    x = x_ref[...].astype(jnp.bfloat16)

    # dense: bf16 MXU matmul, f32 accumulate; bias + ReLU in f32 on the VPU.
    h = jnp.dot(x, w1_ref[...], preferred_element_type=jnp.float32)
    h = jnp.maximum(h + b1_ref[...], 0.0)

    # out_proj: cast hidden to bf16 so the second matmul also takes the MXU
    # bf16 fast path (f32 accumulate). Padded W2 columns are 0 and padded b2
    # entries are -1e30, so phantom classes vanish under log_softmax.
    logits = jnp.dot(h.astype(w2_ref.dtype), w2_ref[...],
                     preferred_element_type=jnp.float32) + b2_ref[...]

    # Numerically stable log_softmax over the lane-dense (padded) class axis.
    m = jnp.max(logits, axis=-1, keepdims=True)
    z = logits - m
    lse = jnp.log(jnp.sum(jnp.exp(z), axis=-1, keepdims=True))
    o_ref[...] = (z - lse).astype(o_ref.dtype)


class NetParams(NamedTuple):
    w1p: jax.Array        # (input_dim, d_h)  bf16, zero-padded hidden cols
    b1p: jax.Array        # (1, d_h)          f32,  zero-padded
    w2p: jax.Array        # (d_h, c_pad)      bf16, zero-padded
    b2p: jax.Array        # (1, c_pad)        f32,  -1e30 in phantom classes
    input_dim: int
    inner_dim: int
    num_classes: int


def prepare_params(w1, b1, w2, b2):
    """One-time padding + bf16 cast of the weights (hoisted out of the forward).

    w1: (input_dim, inner_dim)  (pre-transposed vs. torch's (out, in))
    b1: (inner_dim,)
    w2: (inner_dim, num_classes)
    b2: (num_classes,)
    """
    d_in, inner = w1.shape
    n_cls = w2.shape[1]
    d_h = _round_up(inner, 128)
    c_pad = _round_up(n_cls, 128)

    # Zero-padded weights keep the math identical (ReLU(0)=0, 0-columns add 0);
    # padded out-proj bias is a large negative so log_softmax is unaffected.
    w1p = jnp.zeros((d_in, d_h), jnp.bfloat16).at[:, :inner].set(
        w1.astype(jnp.bfloat16))
    b1p = jnp.zeros((1, d_h), jnp.float32).at[:, :inner].set(
        b1.astype(jnp.float32))
    w2p = jnp.zeros((d_h, c_pad), jnp.bfloat16).at[:inner, :n_cls].set(
        w2.astype(jnp.bfloat16))
    b2p = jnp.full((1, c_pad), -1e30, jnp.float32).at[:, :n_cls].set(
        b2.astype(jnp.float32))
    return NetParams(w1p, b1p, w2p, b2p, d_in, inner, n_cls)


def _pick_batch_tile(batch, block_b):
    """Batch tile: multiple of 16 (bf16 sublane packing), <= block_b, balanced so
    the last tile wastes few rows, and >= 4 grid steps when the batch allows it
    (so v7x's 2 TensorCores each keep >= 2 pipelined steps)."""
    max_blocks_by_rows = pl.cdiv(batch, 16)
    min_blocks = pl.cdiv(batch, block_b)
    target_blocks = max(min_blocks, min(4, max_blocks_by_rows))
    return _round_up(pl.cdiv(batch, target_blocks), 16)


def net_forward(x, params: NetParams, *, block_b=512, trim=True):
    """Forward pass of `Net` (eval mode).

    x: (B, input_dim) float32. Returns (B, num_classes) f32 log-probabilities
    (or the padded (B, c_pad) array if trim=False, avoiding the extra slice).
    """
    B, d_in = x.shape
    assert d_in == params.input_dim
    d_h = params.w1p.shape[1]
    c_pad = params.w2p.shape[1]
    n_cls = params.num_classes

    tb = _pick_batch_tile(B, block_b)
    grid = (pl.cdiv(B, tb),)

    # VMEM budget: resident weights + double-buffered x/out tiles + live
    # intermediates, with ~3x headroom; small floor, capped at the 32 MiB
    # scoped default (well under v7x's 64 MiB physical).
    resident = params.w1p.size * 2 + params.w2p.size * 2 + (
        params.b1p.size + params.b2p.size) * 4
    per_step = 2 * (tb * d_in * 4) + 2 * (tb * c_pad * 4)   # x f32 + out f32, 2-buf
    work = tb * d_in * 2 + tb * d_h * 4 + tb * c_pad * 4    # bf16 x, h, logits
    vmem_bytes = int(min(32 * 1024 * 1024,
                         max(4 * 1024 * 1024,
                             3 * (resident + per_step + work))))

    cost = pl.CostEstimate(
        flops=2 * B * (d_in * d_h + d_h * c_pad),
        transcendentals=B * (c_pad + 1),          # exp per class + log per row
        bytes_accessed=x.size * 4 + resident + B * c_pad * 4,
    )

    # NOTE: resident weight blocks (index_map -> (0, 0)) are not re-fetched per
    # step; pipeline_mode=pl.Buffered(1) single-buffering is intentionally not
    # used (weights are ~200 KB here, and robustness > the few-hundred-KB win).
    out = pl.pallas_call(
        _head_kernel,
        out_shape=jax.ShapeDtypeStruct((B, c_pad), jnp.float32),
        grid=grid,
        in_specs=[
            pl.BlockSpec((tb, d_in), lambda i: (i, 0)),    # x: streams per tile
            pl.BlockSpec((d_in, d_h), lambda i: (0, 0)),   # W1: VMEM-resident
            pl.BlockSpec((1, d_h), lambda i: (0, 0)),      # b1: VMEM-resident
            pl.BlockSpec((d_h, c_pad), lambda i: (0, 0)),  # W2: VMEM-resident
            pl.BlockSpec((1, c_pad), lambda i: (0, 0)),    # b2: VMEM-resident
        ],
        out_specs=pl.BlockSpec((tb, c_pad), lambda i: (i, 0)),
        compiler_params=pltpu.CompilerParams(
            dimension_semantics=("parallel",),
            vmem_limit_bytes=vmem_bytes,
        ),
        cost_estimate=cost,
    )(x, params.w1p, params.b1p, params.w2p, params.b2p)

    if trim:
        return out[:, :n_cls]   # phantom classes are ~-1e30; safe to keep if not trimmed
    return out


def init_params(key, input_dim, inner_dim, num_classes):
    """Deterministic PyTorch-style Linear init: U(-1/sqrt(fan_in), +1/sqrt(fan_in)).
    Weights are stored transposed: (in_features, out_features); biases are 1-D."""
    k1, k2, k3, k4 = jax.random.split(key, 4)
    lim1 = 1.0 / jnp.sqrt(jnp.float32(input_dim))
    lim2 = 1.0 / jnp.sqrt(jnp.float32(inner_dim))
    w1 = jax.random.uniform(k1, (input_dim, inner_dim), jnp.float32, -lim1, lim1)
    b1 = jax.random.uniform(k2, (inner_dim,), jnp.float32, -lim1, lim1)
    w2 = jax.random.uniform(k3, (inner_dim, num_classes), jnp.float32, -lim2, lim2)
    b2 = jax.random.uniform(k4, (num_classes,), jnp.float32, -lim2, lim2)
    return w1, b1, w2, b2


if __name__ == "__main__":
    # Small shapes consistent with the module's forward (x: [batch, input_dim]).
    # batch=300 exercises ragged last-tile handling + a 4-step grid; inner_dim=200
    # and num_classes=7 exercise the lane-dense padding paths.
    batch, input_dim, inner_dim, num_classes = 300, 256, 200, 7

    key = jax.random.PRNGKey(0)
    kx, kp = jax.random.split(key)
    x = jax.random.normal(kx, (batch, input_dim), dtype=jnp.float32)
    w1, b1, w2, b2 = init_params(kp, input_dim, inner_dim, num_classes)

    params = prepare_params(w1, b1, w2, b2)   # one-time padding + bf16 cast
    out = net_forward(x, params, block_b=512)
    jax.block_until_ready(out)

    # Pure-JAX reference mirroring the kernel's bf16-input / f32-accumulate math
    # (dropout = identity in eval mode).
    f32 = jnp.float32
    xb = x.astype(jnp.bfloat16).astype(f32)
    w1b = w1.astype(jnp.bfloat16).astype(f32)
    w2b = w2.astype(jnp.bfloat16).astype(f32)
    h_ref = jnp.maximum(
        jnp.dot(xb, w1b, precision=jax.lax.Precision.HIGHEST) + b1, 0.0)
    hb = h_ref.astype(jnp.bfloat16).astype(f32)
    logits_ref = jnp.dot(hb, w2b, precision=jax.lax.Precision.HIGHEST) + b2
    ref = jax.nn.log_softmax(logits_ref, axis=1)

    assert out.shape == (batch, num_classes)
    assert bool(jnp.all(jnp.isfinite(out)))
    err = float(jnp.max(jnp.abs(out - ref)))
    assert jnp.allclose(out, ref, atol=2e-3, rtol=2e-3), f"max abs err {err}"

    print("KERNEL_OK")
</pallas_src>

<mosaic_0001>
module attributes {stable_mosaic.version = 11 : i64} {
  func.func @_head_kernel(%arg0: i32, %arg1: memref<80x256xf32, #tpu.memory_space<vmem>>, %arg2: memref<256x256xbf16, #tpu.memory_space<vmem>>, %arg3: memref<1x256xf32, #tpu.memory_space<vmem>>, %arg4: memref<256x128xbf16, #tpu.memory_space<vmem>>, %arg5: memref<1x128xf32, #tpu.memory_space<vmem>>, %arg6: memref<80x128xf32, #tpu.memory_space<vmem>>) attributes {dimension_semantics = [#tpu.dimension_semantics<parallel>], iteration_bounds = array<i64: 4>, scalar_prefetch = 0 : i64, scratch_operands = 0 : i64, tpu.core_type = #tpu.core_type<tc>, window_params = [{transform_indices = @transform_0, window_bounds = array<i64: 80, 256>}, {pipeline_mode = #tpu.pipeline_mode<synchronous>, transform_indices = @transform_1, window_bounds = array<i64: 256, 256>}, {pipeline_mode = #tpu.pipeline_mode<synchronous>, transform_indices = @transform_2, window_bounds = array<i64: 1, 256>}, {pipeline_mode = #tpu.pipeline_mode<synchronous>, transform_indices = @transform_3, window_bounds = array<i64: 256, 128>}, {pipeline_mode = #tpu.pipeline_mode<synchronous>, transform_indices = @transform_4, window_bounds = array<i64: 1, 128>}, {transform_indices = @transform_5, window_bounds = array<i64: 80, 128>}]} {
    %c0 = arith.constant 0 : index
    %c0_0 = arith.constant 0 : index
    %0 = vector.load %arg1[%c0, %c0_0] : memref<80x256xf32, #tpu.memory_space<vmem>>, vector<80x256xf32>
    %1 = arith.truncf %0 : vector<80x256xf32> to vector<80x256xbf16>
    %c0_1 = arith.constant 0 : index
    %c0_2 = arith.constant 0 : index
    %2 = vector.load %arg2[%c0_1, %c0_2] : memref<256x256xbf16, #tpu.memory_space<vmem>>, vector<256x256xbf16>
    %cst = arith.constant dense<0.000000e+00> : vector<80x256xf32>
    %3 = tpu.matmul %1, %2, %cst {dimension_numbers = #tpu.dot_dimension_numbers<[1], [0], [0], [1], [0, 0, 1, 1], [], []>} : vector<80x256xbf16>, vector<256x256xbf16>, vector<80x256xf32> -> vector<80x256xf32>
    %c0_3 = arith.constant 0 : index
    %c0_4 = arith.constant 0 : index
    %4 = vector.load %arg3[%c0_3, %c0_4] : memref<1x256xf32, #tpu.memory_space<vmem>>, vector<1x256xf32>
    %5 = vector.broadcast %4 : vector<1x256xf32> to vector<80x256xf32>
    %6 = arith.addf %3, %5 : vector<80x256xf32>
    %cst_5 = arith.constant 0.000000e+00 : f32
    %7 = vector.broadcast %cst_5 : f32 to vector<80x256xf32>
    %8 = arith.maximumf %6, %7 : vector<80x256xf32>
    %9 = arith.truncf %8 : vector<80x256xf32> to vector<80x256xbf16>
    %c0_6 = arith.constant 0 : index
    %c0_7 = arith.constant 0 : index
    %10 = vector.load %arg4[%c0_6, %c0_7] : memref<256x128xbf16, #tpu.memory_space<vmem>>, vector<256x128xbf16>
    %cst_8 = arith.constant dense<0.000000e+00> : vector<80x128xf32>
    %11 = tpu.matmul %9, %10, %cst_8 {dimension_numbers = #tpu.dot_dimension_numbers<[1], [0], [0], [1], [0, 0, 1, 1], [], []>} : vector<80x256xbf16>, vector<256x128xbf16>, vector<80x128xf32> -> vector<80x128xf32>
    %c0_9 = arith.constant 0 : index
    %c0_10 = arith.constant 0 : index
    %12 = vector.load %arg5[%c0_9, %c0_10] : memref<1x128xf32, #tpu.memory_space<vmem>>, vector<1x128xf32>
    %13 = vector.broadcast %12 : vector<1x128xf32> to vector<80x128xf32>
    %14 = arith.addf %11, %13 : vector<80x128xf32>
    %cst_11 = arith.constant dense<0xFF800000> : vector<80xf32>
    %15 = vector.multi_reduction <maximumf>, %14, %cst_11 [1] : vector<80x128xf32> to vector<80xf32>
    %16 = vector.shape_cast %15 : vector<80xf32> to vector<80x1xf32>
    %17 = vector.broadcast %16 : vector<80x1xf32> to vector<80x128xf32>
    %18 = arith.subf %14, %17 : vector<80x128xf32>
    %19 = math.exp %18 : vector<80x128xf32>
    %cst_12 = arith.constant dense<0.000000e+00> : vector<80xf32>
    %20 = vector.multi_reduction <add>, %19, %cst_12 [1] : vector<80x128xf32> to vector<80xf32>
    %21 = vector.shape_cast %20 : vector<80xf32> to vector<80x1xf32>
    %22 = math.log %21 : vector<80x1xf32>
    %23 = vector.broadcast %22 : vector<80x1xf32> to vector<80x128xf32>
    %24 = arith.subf %18, %23 : vector<80x128xf32>
    %c0_13 = arith.constant 0 : index
    %c0_14 = arith.constant 0 : index
    %25 = vector.load %arg6[%c0_13, %c0_14] : memref<80x128xf32, #tpu.memory_space<vmem>>, vector<80x128xf32>
    tpu.vector_store %arg6[%c0_13, %c0_14], %24 {strides = array<i32>} : memref<80x128xf32, #tpu.memory_space<vmem>>, vector<80x128xf32>,
    return
  }
  func.func @transform_0(%arg0: i32) -> (i32, i32) {
    %c0_i32 = arith.constant 0 : i32
    %c0_i32_0 = arith.constant 0 : i32
    return %arg0, %c0_i32 : i32, i32
  }
  func.func @transform_1(%arg0: i32) -> (i32, i32) {
    %c0_i32 = arith.constant 0 : i32
    %c0_i32_0 = arith.constant 0 : i32
    %c0_i32_1 = arith.constant 0 : i32
    return %c0_i32, %c0_i32_0 : i32, i32
  }
  func.func @transform_2(%arg0: i32) -> (i32, i32) {
    %c0_i32 = arith.constant 0 : i32
    %c0_i32_0 = arith.constant 0 : i32
    %c0_i32_1 = arith.constant 0 : i32
    return %c0_i32, %c0_i32_0 : i32, i32
  }
  func.func @transform_3(%arg0: i32) -> (i32, i32) {
    %c0_i32 = arith.constant 0 : i32
    %c0_i32_0 = arith.constant 0 : i32
    %c0_i32_1 = arith.constant 0 : i32
    return %c0_i32, %c0_i32_0 : i32, i32
  }
  func.func @transform_4(%arg0: i32) -> (i32, i32) {
    %c0_i32 = arith.constant 0 : i32
    %c0_i32_0 = arith.constant 0 : i32
    %c0_i32_1 = arith.constant 0 : i32
    return %c0_i32, %c0_i32_0 : i32, i32
  }
  func.func @transform_5(%arg0: i32) -> (i32, i32) {
    %c0_i32 = arith.constant 0 : i32
    %c0_i32_0 = arith.constant 0 : i32
    return %arg0, %c0_i32 : i32, i32
  }
}

</mosaic_0001>

<llo_original>
// kernel: tpu_custom_call.1
$region0: #{tpu_custom_call.1}
  #allocation0 [shape = 'u32[]', space=smem, size = 0x4, offset = 0x4, fixed_abs, tag = 'smem constant byte address 0x4 - core index']
  #allocation1 [shape = 'u32[72,128]{1,0:T(1,128)}', space=vmem, size = 0x9000, scoped, tag = 'internal scratch']
  %s0 = inlined_call_operand.hbm [shape: f32[300,256], index: 0, kind: input, shape index: {}]
  %s1 = inlined_call_operand.hbm [shape: bf16[256,256], index: 1, kind: input, shape index: {}]
  %s2 = inlined_call_operand.hbm [shape: f32[1,256], index: 2, kind: input, shape index: {}]
  %s3 = inlined_call_operand.hbm [shape: bf16[256,128], index: 3, kind: input, shape index: {}]
  %s4 = inlined_call_operand.vmem [shape: f32[1,128], index: 4, kind: input, shape index: {}]
  %s5 = inlined_call_operand.hbm [shape: f32[300,128], index: 5, kind: output, shape index: {}]
  %s6 = sld [smem:[#allocation0]]
  $region69: #{tpu_custom_call.1} parent=0
    _
  %s8 = ssub.s32 1, %s6
  %s9 = scalar_select 0, %s8, %s6
  $region1: #{tpu_custom_call.1} parent=0
    #allocation2 [shape = 'u8[163840]{0}', space=vmem, size = 0x28000, scoped, tag = 'input window, operand 0']
    #allocation3 [shape = 's32[2]{0}', space=sflag, size = 0x8, scoped, tag = 'scoped memory for tpu_custom_call.1']
    #allocation4 [shape = 's32[2]{0}', space=sflag, size = 0x8, scoped, tag = 'scoped memory for tpu_custom_call.1']
    #allocation5 [shape = 'u8[131072]{0}', space=vmem, size = 0x20000, scoped, tag = 'input window, operand 1, single buffered']
    #allocation6 [shape = 's32[1]{0}', space=sflag, size = 0x4, scoped, tag = 'scoped memory for tpu_custom_call.1']
    #allocation7 [shape = 'u8[1024]{0}', space=vmem, size = 0x400, scoped, tag = 'input window, operand 2, single buffered']
    #allocation8 [shape = 'u8[65536]{0}', space=vmem, size = 0x10000, scoped, tag = 'input window, operand 3, single buffered']
    #allocation9 [shape = 's32[1]{0}', space=sflag, size = 0x4, scoped, tag = 'scoped memory for tpu_custom_call.1']
    #allocation10 [shape = 'u8[81920]{0}', space=vmem, size = 0x14000, scoped, tag = 'output window, operand 0']
    %10 = vsyncpa [#allocation3], 0
    %s11 = scalar_lea.sflag [#allocation3], 1
    %12 = vsyncpa %s11, 0
    %13 = vsyncpa [#allocation6], 0
    %14 = vsyncpa [#allocation9], 0
    %15 = vsyncpa [#allocation4], 0
    %s16 = scalar_lea.sflag [#allocation4], 1
    %17 = vsyncpa %s16, 0
    loop: start=0, step=1, limit=6
    $region2: #{tpu_custom_call.1} parent=1 // loop_pre_header
      _
    $region3: #{tpu_custom_call.1} parent=1 // loop_header
      %s19 = sphi 0, %s23
      %p20 = scmp.ge.s32.totalorder %s19, 6
      %s29 = sphi 0, %s31
      %s32 = sphi 0, %s29
      %s33 = sphi 0, %s32
      %s49 = sphi 0, %s33
      %s53 = sphi 0, %s53
      %s55 = sphi 0, %s53
      %s56 = sphi 0, %s55
      %s70 = sphi 0, %s56
      %s74 = sphi 0, %s74
      %s76 = sphi 0, %s74
      %s77 = sphi 0, %s76
      %s91 = sphi 0, %s77
      %s95 = sphi 0, %s95
      %s97 = sphi 0, %s95
      %s98 = sphi 0, %s97
      %s112 = sphi 0, %s98
      %s116 = sphi 0, %s116
      %s118 = sphi 0, %s116
      %s119 = sphi 0, %s118
      %s133 = sphi 0, %s119
      %s139 = sphi 0, %s141
      %s142 = sphi 0, %s139
      %s143 = sphi 0, %s142
      %s159 = sphi 0, %s143
    $region4: #{tpu_custom_call.1} parent=1 // loop_header_branch
      %22 = sbr.rel (%p20) target = $region8
    $region5: #{tpu_custom_call.1} parent=1 // loop_body
      %s24 = ssub.s32 %s19, 1
      %s25 = ssub.s32 %s19, 2
      %s26 = sadd.s32 %s19, 1
      %s27 = ssub.s32 %s19, %s26
      %p28 = scmp.eq.s32.totalorder %s27, 0
      %s30 = sadd.s32 %s29, 1
      %s31 = scalar_select %p28, %s29, %s30
      %p34 = pneg %p28
      %p35 = scmp.eq.s32.totalorder %s19, 3
      %p36 = por %p34, %p35
      %p37 = scmp.ne.s32.totalorder %s29, %s32
      %p38 = scmp.eq.s32.totalorder %s19, 0
      %p39 = por %p37, %p38
      %p40 = scmp.ne.s32.totalorder %s29, %s32
      %p41 = scmp.eq.s32.totalorder %s24, 3
      %p42 = por %p40, %p41
      %p43 = scmp.ne.s32.totalorder %s32, %s33
      %p44 = scmp.eq.s32.totalorder %s24, 0
      %p45 = por %p43, %p44
      %p46 = scmp.ne.s32.totalorder %s32, %s33
      %p47 = scmp.eq.s32.totalorder %s25, 3
      %p48 = por %p46, %p47
      %p50 = scmp.ne.s32.totalorder %s33, %s49
      %p51 = scmp.eq.s32.totalorder %s25, 0
      %p52 = por %p50, %p51
      %s54 = sadd.s32 %s53, 1
      %p57 = scmp.eq.s32.totalorder %s19, 3
      %p58 = scmp.ne.s32.totalorder %s53, %s55
      %p59 = scmp.eq.s32.totalorder %s19, 0
      %p60 = por %p58, %p59
      %p61 = scmp.ne.s32.totalorder %s53, %s55
      %p62 = scmp.eq.s32.totalorder %s24, 3
      %p63 = por %p61, %p62
      %p64 = scmp.ne.s32.totalorder %s55, %s56
      %p65 = scmp.eq.s32.totalorder %s24, 0
      %p66 = por %p64, %p65
      %p67 = scmp.ne.s32.totalorder %s55, %s56
      %p68 = scmp.eq.s32.totalorder %s25, 3
      %p69 = por %p67, %p68
      %p71 = scmp.ne.s32.totalorder %s56, %s70
      %p72 = scmp.eq.s32.totalorder %s25, 0
      %p73 = por %p71, %p72
      %s75 = sadd.s32 %s74, 1
      %p78 = scmp.eq.s32.totalorder %s19, 3
      %p79 = scmp.ne.s32.totalorder %s74, %s76
      %p80 = scmp.eq.s32.totalorder %s19, 0
      %p81 = por %p79, %p80
      %p82 = scmp.ne.s32.totalorder %s74, %s76
      %p83 = scmp.eq.s32.totalorder %s24, 3
      %p84 = por %p82, %p83
      %p85 = scmp.ne.s32.totalorder %s76, %s77
      %p86 = scmp.eq.s32.totalorder %s24, 0
      %p87 = por %p85, %p86
      %p88 = scmp.ne.s32.totalorder %s76, %s77
      %p89 = scmp.eq.s32.totalorder %s25, 3
      %p90 = por %p88, %p89
      %p92 = scmp.ne.s32.totalorder %s77, %s91
      %p93 = scmp.eq.s32.totalorder %s25, 0
      %p94 = por %p92, %p93
      %s96 = sadd.s32 %s95, 1
      %p99 = scmp.eq.s32.totalorder %s19, 3
      %p100 = scmp.ne.s32.totalorder %s95, %s97
      %p101 = scmp.eq.s32.totalorder %s19, 0
      %p102 = por %p100, %p101
      %p103 = scmp.ne.s32.totalorder %s95, %s97
      %p104 = scmp.eq.s32.totalorder %s24, 3
      %p105 = por %p103, %p104
      %p106 = scmp.ne.s32.totalorder %s97, %s98
      %p107 = scmp.eq.s32.totalorder %s24, 0
      %p108 = por %p106, %p107
      %p109 = scmp.ne.s32.totalorder %s97, %s98
      %p110 = scmp.eq.s32.totalorder %s25, 3
      %p111 = por %p109, %p110
      %p113 = scmp.ne.s32.totalorder %s98, %s112
      %p114 = scmp.eq.s32.totalorder %s25, 0
      %p115 = por %p113, %p114
      %s117 = sadd.s32 %s116, 1
      %p120 = scmp.eq.s32.totalorder %s19, 3
      %p121 = scmp.ne.s32.totalorder %s116, %s118
      %p122 = scmp.eq.s32.totalorder %s19, 0
      %p123 = por %p121, %p122
      %p124 = scmp.ne.s32.totalorder %s116, %s118
      %p125 = scmp.eq.s32.totalorder %s24, 3
      %p126 = por %p124, %p125
      %p127 = scmp.ne.s32.totalorder %s118, %s119
      %p128 = scmp.eq.s32.totalorder %s24, 0
      %p129 = por %p127, %p128
      %p130 = scmp.ne.s32.totalorder %s118, %s119
      %p131 = scmp.eq.s32.totalorder %s25, 3
      %p132 = por %p130, %p131
      %p134 = scmp.ne.s32.totalorder %s119, %s133
      %p135 = scmp.eq.s32.totalorder %s25, 0
      %p136 = por %p134, %p135
      %s137 = ssub.s32 %s19, %s26
      %p138 = scmp.eq.s32.totalorder %s137, 0
      %s140 = sadd.s32 %s139, 1
      %s141 = scalar_select %p138, %s139, %s140
      %p144 = pneg %p138
      %p145 = scmp.eq.s32.totalorder %s19, 3
      %p146 = por %p144, %p145
      %p147 = scmp.ne.s32.totalorder %s139, %s142
      %p148 = scmp.eq.s32.totalorder %s19, 0
      %p149 = por %p147, %p148
      %p150 = scmp.ne.s32.totalorder %s139, %s142
      %p151 = scmp.eq.s32.totalorder %s24, 3
      %p152 = por %p150, %p151
      %p153 = scmp.ne.s32.totalorder %s142, %s143
      %p154 = scmp.eq.s32.totalorder %s24, 0
      %p155 = por %p153, %p154
      %p156 = scmp.ne.s32.totalorder %s142, %s143
      %p157 = scmp.eq.s32.totalorder %s25, 3
      %p158 = por %p156, %p157
      %p160 = scmp.ne.s32.totalorder %s143, %s159
      %p161 = scmp.eq.s32.totalorder %s25, 0
      %p162 = por %p160, %p161
      %p163 = scmp.le.s32.totalorder 1, %s19
      %p164 = scmp.lt.s32.totalorder %s19, 5
      %p165 = pnand %p163, %p164
      %p166 = pneg %p165
      // Predicated region
      $region9: #{tpu_custom_call.1} parent=5 // pred_check
        _
      $region10: #{tpu_custom_call.1} parent=5 // pred_check_branch
        %168 = sbr.rel (%p165) target = $region12
      $region11: #{tpu_custom_call.1} parent=5 // pred_region
        %s169 = ssub.s32 %s19, 1
        // Predicated region
        $region13: #{tpu_custom_call.1} parent=11 // pred_check
          %p170 = pneg %p66
        $region14: #{tpu_custom_call.1} parent=11 // pred_check_branch
          %172 = sbr.rel (%p170) target = $region16
        $region15: #{tpu_custom_call.1} parent=11 // pred_region
          %174 = vsyncadd [#allocation6], 0
          %s175 = sshll.u32 %s1, 4
          %s176 = int_to_ptr.hbm [resolvable:$true] %s175
          %s177 = sshll.u32 [#allocation5], 4
          %s178 = int_to_ptr.vmem [resolvable:$true] %s177
          %183 = dma.hbm_to_vmem [thread:$0]  %s176, 4096, %s178, [#allocation6], 128, 128, 8
        $region16: #{tpu_custom_call.1} parent=11 // pred_fallthru
          _
        // Predicated region
        $region17: #{tpu_custom_call.1} parent=11 // pred_check
          %p184 = pneg %p87
        $region18: #{tpu_custom_call.1} parent=11 // pred_check_branch
          %186 = sbr.rel (%p184) target = $region20
        $region19: #{tpu_custom_call.1} parent=11 // pred_region
          %188 = vsyncadd [#allocation6], 0
          %s190 = sshll.u32 %s2, 4
          %s191 = int_to_ptr.hbm [resolvable:$true] %s190
          %s192 = sshll.u32 [#allocation7], 4
          %s193 = int_to_ptr.vmem [resolvable:$true] %s192
          %195 = dma.hbm_to_vmem [thread:$0]  %s191, 32, %s193, [#allocation6]
        $region20: #{tpu_custom_call.1} parent=11 // pred_fallthru
          _
        // Predicated region
        $region21: #{tpu_custom_call.1} parent=11 // pred_check
          %p196 = pneg %p108
        $region22: #{tpu_custom_call.1} parent=11 // pred_check_branch
          %198 = sbr.rel (%p196) target = $region24
        $region23: #{tpu_custom_call.1} parent=11 // pred_region
          %200 = vsyncadd [#allocation9], 0
          %s201 = sshll.u32 %s3, 4
          %s202 = int_to_ptr.hbm [resolvable:$true] %s201
          %s203 = sshll.u32 [#allocation8], 4
          %s204 = int_to_ptr.vmem [resolvable:$true] %s203
          %209 = dma.hbm_to_vmem [thread:$0]  %s202, 2048, %s204, [#allocation9], 64, 64, 4
        $region24: #{tpu_custom_call.1} parent=11 // pred_fallthru
          _
        // Predicated region
        $region25: #{tpu_custom_call.1} parent=11 // pred_check
          %p210 = pneg %p129
        $region26: #{tpu_custom_call.1} parent=11 // pred_check_branch
          %212 = sbr.rel (%p210) target = $region28
        $region27: #{tpu_custom_call.1} parent=11 // pred_region
          _
        $region28: #{tpu_custom_call.1} parent=11 // pred_fallthru
          _
      $region12: #{tpu_custom_call.1} parent=5 // pred_fallthru
        _
      %p213 = scmp.lt.s32.totalorder %s19, 4
      // Predicated region
      $region29: #{tpu_custom_call.1} parent=5 // pred_check
        %p214 = pneg %p213
      $region30: #{tpu_custom_call.1} parent=5 // pred_check_branch
        %216 = sbr.rel (%p214) target = $region32
      $region31: #{tpu_custom_call.1} parent=5 // pred_region
        // Predicated region
        $region33: #{tpu_custom_call.1} parent=31 // pred_check
          %p217 = pneg %p39
        $region34: #{tpu_custom_call.1} parent=31 // pred_check_branch
          %219 = sbr.rel (%p217) target = $region36
        $region35: #{tpu_custom_call.1} parent=31 // pred_region
          %s220 = sand.u32 %s29, 1
          %s221 = scalar_lea.sflag [#allocation3], %s220
          %s222 = sand.u32 %s29, 1
          %s223 = smul.addr %s222, 160
          %s224 = scalar_lea.vmem [#allocation2], %s223
          %s225 = smul.u32 10, %s19
          %s226 = ssub.s32 38, %s225
          %p227 = scmp.lt.s32.totalorder %s226, 10
          %s228 = scalar_select %p227, %s226, 10
          %s229 = smul.u32 8, %s228
          %s230 = smul.u32 %s229, 2
          %s231 = ssub.s32 160, %s230
          %s232 = sshll.u32 %s231, 4
          %233 = vsyncadd %s221, %s232
          %p234 = scmp.ne.s32.totalorder 0, %s230
          %s235 = smul.addr %s225, 2
          %s236 = smul.addr %s235, 8
          %s237 = scalar_lea.hbm %s0, %s236
          %s238 = smul.u32 16, %s228
          %s239 = sshll.u32 %s237, 4
          %s240 = int_to_ptr.hbm [resolvable:$true] %s239
          %s241 = sshll.u32 %s224, 4
          %s242 = int_to_ptr.vmem [resolvable:$true] %s241
          %s243 = sshll.u32 %s238, 4
          %247 = dma.hbm_to_vmem [thread:$0]  (%p234), %s240, %s243, %s242, %s221, 256, 256, 16
        $region36: #{tpu_custom_call.1} parent=31 // pred_fallthru
          _
      $region32: #{tpu_custom_call.1} parent=5 // pred_fallthru
        _
      %p248 = scmp.le.s32.totalorder 1, %s19
      %p249 = scmp.lt.s32.totalorder %s19, 5
      %p250 = pnand %p248, %p249
      %p251 = pneg %p250
      // Predicated region
      $region37: #{tpu_custom_call.1} parent=5 // pred_check
        _
      $region38: #{tpu_custom_call.1} parent=5 // pred_check_branch
        %253 = sbr.rel (%p250) target = $region40
      $region39: #{tpu_custom_call.1} parent=5 // pred_region
        %s254 = ssub.s32 %s19, 1
        %s255 = sand.u32 %s32, 1
        %s256 = scalar_lea.sflag [#allocation3], %s255
        %s257 = sand.u32 %s32, 1
        %s258 = smul.addr %s257, 160
        %s259 = scalar_lea.vmem [#allocation2], %s258
        // Predicated region
        $region41: #{tpu_custom_call.1} parent=39 // pred_check
          %p260 = pneg %p45
        $region42: #{tpu_custom_call.1} parent=39 // pred_check_branch
          %262 = sbr.rel (%p260) target = $region44
        $region43: #{tpu_custom_call.1} parent=39 // pred_region
          %264 = dma.done %s256, 2560
        $region44: #{tpu_custom_call.1} parent=39 // pred_fallthru
          _
        // Predicated region
        $region45: #{tpu_custom_call.1} parent=39 // pred_check
          %p265 = pneg %p66
        $region46: #{tpu_custom_call.1} parent=39 // pred_check_branch
          %267 = sbr.rel (%p265) target = $region48
        $region47: #{tpu_custom_call.1} parent=39 // pred_region
          %269 = dma.done [#allocation6], 4096
        $region48: #{tpu_custom_call.1} parent=39 // pred_fallthru
          _
        // Predicated region
        $region49: #{tpu_custom_call.1} parent=39 // pred_check
          %p270 = pneg %p87
        $region50: #{tpu_custom_call.1} parent=39 // pred_check_branch
          %272 = sbr.rel (%p270) target = $region52
        $region51: #{tpu_custom_call.1} parent=39 // pred_region
          %274 = dma.done [#allocation6], 32
        $region52: #{tpu_custom_call.1} parent=39 // pred_fallthru
          _
        // Predicated region
        $region53: #{tpu_custom_call.1} parent=39 // pred_check
          %p275 = pneg %p108
        $region54: #{tpu_custom_call.1} parent=39 // pred_check_branch
          %277 = sbr.rel (%p275) target = $region56
        $region55: #{tpu_custom_call.1} parent=39 // pred_region
          %279 = dma.done [#allocation9], 2048
        $region56: #{tpu_custom_call.1} parent=39 // pred_fallthru
          _
        %s280 = sand.u32 %s32, 1
        %s281 = scalar_lea.sflag [#allocation3], %s280
        %s282 = sand.u32 %s32, 1
        %s283 = smul.addr %s282, 160
        %s284 = scalar_lea.vmem [#allocation2], %s283
        %p285 = pneg %p45
        %p286 = pneg %p42
        %p287 = pneg %p66
        %p288 = pneg %p63
        %p289 = pneg %p87
        %p290 = pneg %p84
        %p291 = pneg %p108
        %p292 = pneg %p105
        %p293 = pneg %p129
        %p294 = pneg %p126
        %p295 = pneg %p155
        %p296 = pneg %p152
        %s297 = sand.u32 %s142, 1
        %s298 = scalar_lea.sflag [#allocation4], %s297
        %s299 = sand.u32 %s142, 1
        %s300 = smul.addr %s299, 80
        %s301 = scalar_lea.vmem [#allocation10], %s300
        %s302 = smul.u32 10, %s24
        %s303 = ssub.s32 38, %s302
        %p304 = scmp.lt.s32.totalorder %s303, 10
        %s305 = scalar_select %p304, %s303, 10
        %s306 = smul.u32 8, %s305
        %s307 = smul.u32 %s306, 2
        %s308 = smul.u32 10, %s24
        %s309 = ssub.s32 38, %s308
        %p310 = scmp.lt.s32.totalorder %s309, 10
        %s311 = scalar_select %p310, %s309, 10
        %s312 = smul.u32 8, %s311
        %v313 = vld [vmem:[%s259] sm:$0xff]
        %v314 = vld [vmem:[%s259 + $0x8] sm:$0xff]
        %v315 = vld [vmem:[%s259 + $0x10] sm:$0xff]
        %v316 = vld [vmem:[%s259 + $0x18] sm:$0xff]
        %v317 = vld [vmem:[%s259 + $0x20] sm:$0xff]
        %v318 = vld [vmem:[%s259 + $0x28] sm:$0xff]
        %v319 = vld [vmem:[%s259 + $0x30] sm:$0xff]
        %v320 = vld [vmem:[%s259 + $0x38] sm:$0xff]
        %v321 = vld [vmem:[%s259 + $0x40] sm:$0xff]
        %v322 = vld [vmem:[%s259 + $0x48] sm:$0xff]
        %v323 = vld [vmem:[%s259 + $0x50] sm:$0xff]
        %v324 = vld [vmem:[%s259 + $0x58] sm:$0xff]
        %v325 = vld [vmem:[%s259 + $0x60] sm:$0xff]
        %v326 = vld [vmem:[%s259 + $0x68] sm:$0xff]
        %v327 = vld [vmem:[%s259 + $0x70] sm:$0xff]
        %v328 = vld [vmem:[%s259 + $0x78] sm:$0xff]
        %v329 = vld [vmem:[%s259 + $0x80] sm:$0xff]
        %v330 = vld [vmem:[%s259 + $0x88] sm:$0xff]
        %v331 = vld [vmem:[%s259 + $0x90] sm:$0xff]
        %v332 = vld [vmem:[%s259 + $0x98] sm:$0xff]
        %v333 = vpack.c.bf16 %v315, %v313
        %v334 = vpack.c.bf16 %v316, %v314
        %v335 = vpack.c.bf16 %v319, %v317
        %v336 = vpack.c.bf16 %v320, %v318
        %v337 = vpack.c.bf16 %v323, %v321
        %v338 = vpack.c.bf16 %v324, %v322
        %v339 = vpack.c.bf16 %v327, %v325
        %v340 = vpack.c.bf16 %v328, %v326
        %v341 = vpack.c.bf16 %v331, %v329
        %v342 = vpack.c.bf16 %v332, %v330
        %v343 = vld [vmem:[#allocation5] sm:$0xff]
        %v344 = vld [vmem:[#allocation5 + $0x8] sm:$0xff]
        %v345 = vld [vmem:[#allocation5 + $0x10] sm:$0xff]
        %v346 = vld [vmem:[#allocation5 + $0x18] sm:$0xff]
        %v347 = vld [vmem:[#allocation5 + $0x20] sm:$0xff]
        %v348 = vld [vmem:[#allocation5 + $0x28] sm:$0xff]
        %v349 = vld [vmem:[#allocation5 + $0x30] sm:$0xff]
        %v350 = vld [vmem:[#allocation5 + $0x38] sm:$0xff]
        %v351 = vld [vmem:[#allocation5 + $0x40] sm:$0xff]
        %v352 = vld [vmem:[#allocation5 + $0x48] sm:$0xff]
        %v353 = vld [vmem:[#allocation5 + $0x50] sm:$0xff]
        %v354 = vld [vmem:[#allocation5 + $0x58] sm:$0xff]
        %v355 = vld [vmem:[#allocation5 + $0x60] sm:$0xff]
        %v356 = vld [vmem:[#allocation5 + $0x68] sm:$0xff]
        %v357 = vld [vmem:[#allocation5 + $0x70] sm:$0xff]
        %v358 = vld [vmem:[#allocation5 + $0x78] sm:$0xff]
        %v359 = vld [vmem:[#allocation5 + $0x80] sm:$0xff]
        %v360 = vld [vmem:[#allocation5 + $0x88] sm:$0xff]
        %v361 = vld [vmem:[#allocation5 + $0x90] sm:$0xff]
        %v362 = vld [vmem:[#allocation5 + $0x98] sm:$0xff]
        %v363 = vld [vmem:[#allocation5 + $0xa0] sm:$0xff]
        %v364 = vld [vmem:[#allocation5 + $0xa8] sm:$0xff]
        %v365 = vld [vmem:[#allocation5 + $0xb0] sm:$0xff]
        %v366 = vld [vmem:[#allocation5 + $0xb8] sm:$0xff]
        %v367 = vld [vmem:[#allocation5 + $0xc0] sm:$0xff]
        %v368 = vld [vmem:[#allocation5 + $0xc8] sm:$0xff]
        %v369 = vld [vmem:[#allocation5 + $0xd0] sm:$0xff]
        %v370 = vld [vmem:[#allocation5 + $0xd8] sm:$0xff]
        %v371 = vld [vmem:[#allocation5 + $0xe0] sm:$0xff]
        %v372 = vld [vmem:[#allocation5 + $0xe8] sm:$0xff]
        %v373 = vld [vmem:[#allocation5 + $0xf0] sm:$0xff]
        %v374 = vld [vmem:[#allocation5 + $0xf8] sm:$0xff]
        %v375 = vld [vmem:[#allocation7] sm:$0x3]
        %v377 = vperm.slane %v375, 0
        %v378 = vperm.slane %v375, 1
        %v413 = vunpack.c.l.b16 %v343
        %v414 = vunpack.c.h.b16 %v343
        %v415 = vunpack.c.l.b16 %v344
        %v416 = vunpack.c.h.b16 %v344
        %v417 = vunpack.c.l.b16 %v345
        %v418 = vunpack.c.h.b16 %v345
        %v419 = vunpack.c.l.b16 %v346
        %v420 = vunpack.c.h.b16 %v346
        %v421 = vunpack.c.l.b16 %v347
        %v422 = vunpack.c.h.b16 %v347
        %v423 = vunpack.c.l.b16 %v348
        %v424 = vunpack.c.h.b16 %v348
        %v425 = vunpack.c.l.b16 %v349
        %v426 = vunpack.c.h.b16 %v349
        %v427 = vunpack.c.l.b16 %v350
        %v428 = vunpack.c.h.b16 %v350
        %v429 = vunpack.c.l.b16 %v351
        %v430 = vunpack.c.h.b16 %v351
        %v431 = vunpack.c.l.b16 %v352
        %v432 = vunpack.c.h.b16 %v352
        %v433 = vunpack.c.l.b16 %v353
        %v434 = vunpack.c.h.b16 %v353
        %v435 = vunpack.c.l.b16 %v354
        %v436 = vunpack.c.h.b16 %v354
        %v437 = vunpack.c.l.b16 %v355
        %v438 = vunpack.c.h.b16 %v355
        %v439 = vunpack.c.l.b16 %v356
        %v440 = vunpack.c.h.b16 %v356
        %v441 = vunpack.c.l.b16 %v357
        %v442 = vunpack.c.h.b16 %v357
        %v443 = vunpack.c.l.b16 %v358
        %v444 = vunpack.c.h.b16 %v358
        %v445 = vunpack.c.l.b16 %v359
        %v446 = vunpack.c.h.b16 %v359
        %v447 = vunpack.c.l.b16 %v360
        %v448 = vunpack.c.h.b16 %v360
        %v449 = vunpack.c.l.b16 %v361
        %v450 = vunpack.c.h.b16 %v361
        %v451 = vunpack.c.l.b16 %v362
        %v452 = vunpack.c.h.b16 %v362
        %v453 = vunpack.c.l.b16 %v363
        %v454 = vunpack.c.h.b16 %v363
        %v455 = vunpack.c.l.b16 %v364
        %v456 = vunpack.c.h.b16 %v364
        %v457 = vunpack.c.l.b16 %v365
        %v458 = vunpack.c.h.b16 %v365
        %v459 = vunpack.c.l.b16 %v366
        %v460 = vunpack.c.h.b16 %v366
        %v461 = vunpack.c.l.b16 %v367
        %v462 = vunpack.c.h.b16 %v367
        %v463 = vunpack.c.l.b16 %v368
        %v464 = vunpack.c.h.b16 %v368
        %v465 = vunpack.c.l.b16 %v369
        %v466 = vunpack.c.h.b16 %v369
        %v467 = vunpack.c.l.b16 %v370
        %v468 = vunpack.c.h.b16 %v370
        %v469 = vunpack.c.l.b16 %v371
        %v470 = vunpack.c.h.b16 %v371
        %v471 = vunpack.c.l.b16 %v372
        %v472 = vunpack.c.h.b16 %v372
        %v473 = vunpack.c.l.b16 %v373
        %v474 = vunpack.c.h.b16 %v373
        %v475 = vunpack.c.l.b16 %v374
        %v476 = vunpack.c.h.b16 %v374
        %v477 = vpack.c.b16 %v415, %v413
        %v478 = vpack.c.b16 %v416, %v414
        %v479 = vpack.c.b16 %v419, %v417
        %v480 = vpack.c.b16 %v420, %v418
        %v481 = vpack.c.b16 %v423, %v421
        %v482 = vpack.c.b16 %v424, %v422
        %v483 = vpack.c.b16 %v427, %v425
        %v484 = vpack.c.b16 %v428, %v426
        %v485 = vpack.c.b16 %v431, %v429
        %v486 = vpack.c.b16 %v432, %v430
        %v487 = vpack.c.b16 %v435, %v433
        %v488 = vpack.c.b16 %v436, %v434
        %v489 = vpack.c.b16 %v439, %v437
        %v490 = vpack.c.b16 %v440, %v438
        %v491 = vpack.c.b16 %v443, %v441
        %v492 = vpack.c.b16 %v444, %v442
        %v493 = vpack.c.b16 %v447, %v445
        %v494 = vpack.c.b16 %v448, %v446
        %v495 = vpack.c.b16 %v451, %v449
        %v496 = vpack.c.b16 %v452, %v450
        %v497 = vpack.c.b16 %v455, %v453
        %v498 = vpack.c.b16 %v456, %v454
        %v499 = vpack.c.b16 %v459, %v457
        %v500 = vpack.c.b16 %v460, %v458
        %v501 = vpack.c.b16 %v463, %v461
        %v502 = vpack.c.b16 %v464, %v462
        %v503 = vpack.c.b16 %v467, %v465
        %v504 = vpack.c.b16 %v468, %v466
        %v505 = vpack.c.b16 %v471, %v469
        %v506 = vpack.c.b16 %v472, %v470
        %v507 = vpack.c.b16 %v475, %v473
        %v508 = vpack.c.b16 %v476, %v474
        %541 = vmatpush.bf16.msra.mxu0 %v491
        %542 = vmatpush.bf16.msra.mxu0 %v489
        %543 = vmatpush.bf16.msra.mxu0 %v487
        %544 = vmatpush.bf16.msra.mxu0 %v485
        %545 = vmatpush.bf16.msra.mxu0 %v483
        %546 = vmatpush.bf16.msra.mxu0 %v481
        %547 = vmatpush.bf16.msra.mxu0 %v479
        %548 = vmatpush.bf16.msra.mxu0 %v477
        %549 = vmatmul.bf16.gmra.mxu0 %v333
        %v550 = vpop.f32.mrf.mxu0
        %v551 = vadd.f32 %v377, %v550
        %v552 = vpop.f32.mrf.mxu0
        %v553 = vadd.f32 %v377, %v552
        %554 = vmatmul.bf16.gmra.mxu0 %v335
        %v555 = vpop.f32.mrf.mxu0
        %v556 = vadd.f32 %v377, %v555
        %v557 = vpop.f32.mrf.mxu0
        %v558 = vadd.f32 %v377, %v557
        %559 = vmatmul.bf16.gmra.mxu0 %v337
        %v560 = vpop.f32.mrf.mxu0
        %v561 = vadd.f32 %v377, %v560
        %v562 = vpop.f32.mrf.mxu0
        %v563 = vadd.f32 %v377, %v562
        %564 = vmatmul.bf16.gmra.mxu0 %v339
        %v565 = vpop.f32.mrf.mxu0
        %v566 = vadd.f32 %v377, %v565
        %v567 = vpop.f32.mrf.mxu0
        %v568 = vadd.f32 %v377, %v567
        %569 = vmatmul.bf16.gmra.mxu0 %v341
        %v570 = vpop.f32.mrf.mxu0
        %v571 = vadd.f32 %v377, %v570
        %v572 = vpop.f32.mrf.mxu0
        %v573 = vadd.f32 %v377, %v572
        %574 = vdwg.mxu0
        %575 = vmatpush.bf16.msra.mxu0 %v507
        %576 = vmatpush.bf16.msra.mxu0 %v505
        %577 = vmatpush.bf16.msra.mxu0 %v503
        %578 = vmatpush.bf16.msra.mxu0 %v501
        %579 = vmatpush.bf16.msra.mxu0 %v499
        %580 = vmatpush.bf16.msra.mxu0 %v497
        %581 = vmatpush.bf16.msra.mxu0 %v495
        %582 = vmatpush.bf16.msra.mxu0 %v493
        %583 = vmatmul.bf16.gmra.mxu0 %v334
        %v584 = vpop.f32.mrf.mxu0
        %v585 = vadd.f32 %v551, %v584
        %v586 = vpop.f32.mrf.mxu0
        %v587 = vadd.f32 %v553, %v586
        %588 = vmatmul.bf16.gmra.mxu0 %v336
        %v589 = vpop.f32.mrf.mxu0
        %v590 = vadd.f32 %v556, %v589
        %v591 = vpop.f32.mrf.mxu0
        %v592 = vadd.f32 %v558, %v591
        %593 = vmatmul.bf16.gmra.mxu0 %v338
        %v594 = vpop.f32.mrf.mxu0
        %v595 = vadd.f32 %v561, %v594
        %v596 = vpop.f32.mrf.mxu0
        %v597 = vadd.f32 %v563, %v596
        %598 = vmatmul.bf16.gmra.mxu0 %v340
        %v599 = vpop.f32.mrf.mxu0
        %v600 = vadd.f32 %v566, %v599
        %v601 = vpop.f32.mrf.mxu0
        %v602 = vadd.f32 %v568, %v601
        %603 = vmatmul.bf16.gmra.mxu0 %v342
        %v604 = vpop.f32.mrf.mxu0
        %v605 = vadd.f32 %v571, %v604
        %v606 = vpop.f32.mrf.mxu0
        %v607 = vadd.f32 %v573, %v606
        %608 = vdwg.mxu0
        %609 = vmatpush.bf16.msra.mxu0 %v492
        %610 = vmatpush.bf16.msra.mxu0 %v490
        %611 = vmatpush.bf16.msra.mxu0 %v488
        %612 = vmatpush.bf16.msra.mxu0 %v486
        %613 = vmatpush.bf16.msra.mxu0 %v484
        %614 = vmatpush.bf16.msra.mxu0 %v482
        %615 = vmatpush.bf16.msra.mxu0 %v480
        %616 = vmatpush.bf16.msra.mxu0 %v478
        %617 = vmatmul.bf16.gmra.mxu0 %v333
        %v618 = vpop.f32.mrf.mxu0
        %v619 = vadd.f32 %v378, %v618
        %v620 = vpop.f32.mrf.mxu0
        %v621 = vadd.f32 %v378, %v620
        %622 = vmatmul.bf16.gmra.mxu0 %v335
        %v623 = vpop.f32.mrf.mxu0
        %v624 = vadd.f32 %v378, %v623
        %v625 = vpop.f32.mrf.mxu0
        %v626 = vadd.f32 %v378, %v625
        %627 = vmatmul.bf16.gmra.mxu0 %v337
        %v628 = vpop.f32.mrf.mxu0
        %v629 = vadd.f32 %v378, %v628
        %v630 = vpop.f32.mrf.mxu0
        %v631 = vadd.f32 %v378, %v630
        %632 = vmatmul.bf16.gmra.mxu0 %v339
        %v633 = vpop.f32.mrf.mxu0
        %v634 = vadd.f32 %v378, %v633
        %v635 = vpop.f32.mrf.mxu0
        %v636 = vadd.f32 %v378, %v635
        %637 = vmatmul.bf16.gmra.mxu0 %v341
        %v638 = vpop.f32.mrf.mxu0
        %v639 = vadd.f32 %v378, %v638
        %v640 = vpop.f32.mrf.mxu0
        %v641 = vadd.f32 %v378, %v640
        %642 = vdwg.mxu0
        %643 = vmatpush.bf16.msra.mxu0 %v508
        %644 = vmatpush.bf16.msra.mxu0 %v506
        %645 = vmatpush.bf16.msra.mxu0 %v504
        %646 = vmatpush.bf16.msra.mxu0 %v502
        %647 = vmatpush.bf16.msra.mxu0 %v500
        %648 = vmatpush.bf16.msra.mxu0 %v498
        %649 = vmatpush.bf16.msra.mxu0 %v496
        %650 = vmatpush.bf16.msra.mxu0 %v494
        %651 = vmatmul.bf16.gmra.mxu0 %v334
        %v652 = vpop.f32.mrf.mxu0
        %v653 = vadd.f32 %v619, %v652
        %v654 = vpop.f32.mrf.mxu0
        %v655 = vadd.f32 %v621, %v654
        %656 = vmatmul.bf16.gmra.mxu0 %v336
        %v657 = vpop.f32.mrf.mxu0
        %v658 = vadd.f32 %v624, %v657
        %v659 = vpop.f32.mrf.mxu0
        %v660 = vadd.f32 %v626, %v659
        %661 = vmatmul.bf16.gmra.mxu0 %v338
        %v662 = vpop.f32.mrf.mxu0
        %v663 = vadd.f32 %v629, %v662
        %v664 = vpop.f32.mrf.mxu0
        %v665 = vadd.f32 %v631, %v664
        %666 = vmatmul.bf16.gmra.mxu0 %v340
        %v667 = vpop.f32.mrf.mxu0
        %v668 = vadd.f32 %v634, %v667
        %v669 = vpop.f32.mrf.mxu0
        %v670 = vadd.f32 %v636, %v669
        %671 = vmatmul.bf16.gmra.mxu0 %v342
        %v672 = vpop.f32.mrf.mxu0
        %v673 = vadd.f32 %v639, %v672
        %v674 = vpop.f32.mrf.mxu0
        %v675 = vadd.f32 %v641, %v674
        %676 = vdwg.mxu0
        %v677 = vmax.f32 %v585, 0.0
        %v678 = vmax.f32 %v653, 0.0
        %v679 = vmax.f32 %v587, 0.0
        %v680 = vmax.f32 %v655, 0.0
        %v681 = vmax.f32 %v590, 0.0
        %v682 = vmax.f32 %v658, 0.0
        %v683 = vmax.f32 %v592, 0.0
        %v684 = vmax.f32 %v660, 0.0
        %v685 = vmax.f32 %v595, 0.0
        %v686 = vmax.f32 %v663, 0.0
        %v687 = vmax.f32 %v597, 0.0
        %v688 = vmax.f32 %v665, 0.0
        %v689 = vmax.f32 %v600, 0.0
        %v690 = vmax.f32 %v668, 0.0
        %v691 = vmax.f32 %v602, 0.0
        %v692 = vmax.f32 %v670, 0.0
        %v693 = vmax.f32 %v605, 0.0
        %v694 = vmax.f32 %v673, 0.0
        %v695 = vmax.f32 %v607, 0.0
        %v696 = vmax.f32 %v675, 0.0
        %v697 = vpack.c.bf16 %v679, %v677
        %v698 = vpack.c.bf16 %v680, %v678
        %v699 = vpack.c.bf16 %v683, %v681
        %v700 = vpack.c.bf16 %v684, %v682
        %v701 = vpack.c.bf16 %v687, %v685
        %v702 = vpack.c.bf16 %v688, %v686
        %v703 = vpack.c.bf16 %v691, %v689
        %v704 = vpack.c.bf16 %v692, %v690
        %v705 = vpack.c.bf16 %v695, %v693
        %v706 = vpack.c.bf16 %v696, %v694
        %v707 = vld [vmem:[#allocation8] sm:$0xf]
        %v708 = vld [vmem:[#allocation8 + $0x4] sm:$0xf]
        %v709 = vld [vmem:[#allocation8 + $0x8] sm:$0xf]
        %v710 = vld [vmem:[#allocation8 + $0xc] sm:$0xf]
        %v711 = vld [vmem:[#allocation8 + $0x10] sm:$0xf]
        %v712 = vld [vmem:[#allocation8 + $0x14] sm:$0xf]
        %v713 = vld [vmem:[#allocation8 + $0x18] sm:$0xf]
        %v714 = vld [vmem:[#allocation8 + $0x1c] sm:$0xf]
        %v715 = vld [vmem:[#allocation8 + $0x20] sm:$0xf]
        %v716 = vld [vmem:[#allocation8 + $0x24] sm:$0xf]
        %v717 = vld [vmem:[#allocation8 + $0x28] sm:$0xf]
        %v718 = vld [vmem:[#allocation8 + $0x2c] sm:$0xf]
        %v719 = vld [vmem:[#allocation8 + $0x30] sm:$0xf]
        %v720 = vld [vmem:[#allocation8 + $0x34] sm:$0xf]
        %v721 = vld [vmem:[#allocation8 + $0x38] sm:$0xf]
        %v722 = vld [vmem:[#allocation8 + $0x3c] sm:$0xf]
        %v723 = vld [vmem:[#allocation8 + $0x40] sm:$0xf]
        %v724 = vld [vmem:[#allocation8 + $0x44] sm:$0xf]
        %v725 = vld [vmem:[#allocation8 + $0x48] sm:$0xf]
        %v726 = vld [vmem:[#allocation8 + $0x4c] sm:$0xf]
        %v727 = vld [vmem:[#allocation8 + $0x50] sm:$0xf]
        %v728 = vld [vmem:[#allocation8 + $0x54] sm:$0xf]
        %v729 = vld [vmem:[#allocation8 + $0x58] sm:$0xf]
        %v730 = vld [vmem:[#allocation8 + $0x5c] sm:$0xf]
        %v731 = vld [vmem:[#allocation8 + $0x60] sm:$0xf]
        %v732 = vld [vmem:[#allocation8 + $0x64] sm:$0xf]
        %v733 = vld [vmem:[#allocation8 + $0x68] sm:$0xf]
        %v734 = vld [vmem:[#allocation8 + $0x6c] sm:$0xf]
        %v735 = vld [vmem:[#allocation8 + $0x70] sm:$0xf]
        %v736 = vld [vmem:[#allocation8 + $0x74] sm:$0xf]
        %v737 = vld [vmem:[#allocation8 + $0x78] sm:$0xf]
        %v738 = vld [vmem:[#allocation8 + $0x7c] sm:$0xf]
        %v739 = vld [vmem:[%s4] sm:$0x1]
        %v741 = vperm.slane %v739, 0
        %v775 = vunpack.c.l.b16 %v707
        %v776 = vunpack.c.l.b16 %v708
        %v777 = vunpack.c.l.b16 %v709
        %v778 = vunpack.c.l.b16 %v710
        %v779 = vunpack.c.l.b16 %v711
        %v780 = vunpack.c.l.b16 %v712
        %v781 = vunpack.c.l.b16 %v713
        %v782 = vunpack.c.l.b16 %v714
        %v783 = vunpack.c.l.b16 %v715
        %v784 = vunpack.c.l.b16 %v716
        %v785 = vunpack.c.l.b16 %v717
        %v786 = vunpack.c.l.b16 %v718
        %v787 = vunpack.c.l.b16 %v719
        %v788 = vunpack.c.l.b16 %v720
        %v789 = vunpack.c.l.b16 %v721
        %v790 = vunpack.c.l.b16 %v722
        %v791 = vunpack.c.l.b16 %v723
        %v792 = vunpack.c.l.b16 %v724
        %v793 = vunpack.c.l.b16 %v725
        %v794 = vunpack.c.l.b16 %v726
        %v795 = vunpack.c.l.b16 %v727
        %v796 = vunpack.c.l.b16 %v728
        %v797 = vunpack.c.l.b16 %v729
        %v798 = vunpack.c.l.b16 %v730
        %v799 = vunpack.c.l.b16 %v731
        %v800 = vunpack.c.l.b16 %v732
        %v801 = vunpack.c.l.b16 %v733
        %v802 = vunpack.c.l.b16 %v734
        %v803 = vunpack.c.l.b16 %v735
        %v804 = vunpack.c.l.b16 %v736
        %v805 = vunpack.c.l.b16 %v737
        %v806 = vunpack.c.l.b16 %v738
        %v807 = vpack.c.b16 %v776, %v775
        %v808 = vpack.c.b16 %v778, %v777
        %v809 = vpack.c.b16 %v780, %v779
        %v810 = vpack.c.b16 %v782, %v781
        %v811 = vpack.c.b16 %v784, %v783
        %v812 = vpack.c.b16 %v786, %v785
        %v813 = vpack.c.b16 %v788, %v787
        %v814 = vpack.c.b16 %v790, %v789
        %v815 = vpack.c.b16 %v792, %v791
        %v816 = vpack.c.b16 %v794, %v793
        %v817 = vpack.c.b16 %v796, %v795
        %v818 = vpack.c.b16 %v798, %v797
        %v819 = vpack.c.b16 %v800, %v799
        %v820 = vpack.c.b16 %v802, %v801
        %v821 = vpack.c.b16 %v804, %v803
        %v822 = vpack.c.b16 %v806, %v805
        %839 = vmatpush.bf16.msra.mxu0 %v814
        %840 = vmatpush.bf16.msra.mxu0 %v813
        %841 = vmatpush.bf16.msra.mxu0 %v812
        %842 = vmatpush.bf16.msra.mxu0 %v811
        %843 = vmatpush.bf16.msra.mxu0 %v810
        %844 = vmatpush.bf16.msra.mxu0 %v809
        %845 = vmatpush.bf16.msra.mxu0 %v808
        %846 = vmatpush.bf16.msra.mxu0 %v807
        %847 = vmatmul.bf16.gmra.mxu0 %v697
        %v848 = vpop.f32.mrf.mxu0
        %v849 = vadd.f32 %v741, %v848
        %v850 = vpop.f32.mrf.mxu0
        %v851 = vadd.f32 %v741, %v850
        %852 = vmatmul.bf16.gmra.mxu0 %v699
        %v853 = vpop.f32.mrf.mxu0
        %v854 = vadd.f32 %v741, %v853
        %v855 = vpop.f32.mrf.mxu0
        %v856 = vadd.f32 %v741, %v855
        %857 = vmatmul.bf16.gmra.mxu0 %v701
        %v858 = vpop.f32.mrf.mxu0
        %v859 = vadd.f32 %v741, %v858
        %v860 = vpop.f32.mrf.mxu0
        %v861 = vadd.f32 %v741, %v860
        %862 = vmatmul.bf16.gmra.mxu0 %v703
        %v863 = vpop.f32.mrf.mxu0
        %v864 = vadd.f32 %v741, %v863
        %v865 = vpop.f32.mrf.mxu0
        %v866 = vadd.f32 %v741, %v865
        %867 = vmatmul.bf16.gmra.mxu0 %v705
        %v868 = vpop.f32.mrf.mxu0
        %v869 = vadd.f32 %v741, %v868
        %v870 = vpop.f32.mrf.mxu0
        %v871 = vadd.f32 %v741, %v870
        %872 = vdwg.mxu0
        %873 = vmatpush.bf16.msra.mxu0 %v822
        %874 = vmatpush.bf16.msra.mxu0 %v821
        %875 = vmatpush.bf16.msra.mxu0 %v820
        %876 = vmatpush.bf16.msra.mxu0 %v819
        %877 = vmatpush.bf16.msra.mxu0 %v818
        %878 = vmatpush.bf16.msra.mxu0 %v817
        %879 = vmatpush.bf16.msra.mxu0 %v816
        %880 = vmatpush.bf16.msra.mxu0 %v815
        %881 = vmatmul.bf16.gmra.mxu0 %v698
        %v882 = vpop.f32.mrf.mxu0
        %v883 = vadd.f32 %v849, %v882
        %v884 = vpop.f32.mrf.mxu0
        %v885 = vadd.f32 %v851, %v884
        %886 = vmatmul.bf16.gmra.mxu0 %v700
        %v887 = vpop.f32.mrf.mxu0
        %v888 = vadd.f32 %v854, %v887
        %v889 = vpop.f32.mrf.mxu0
        %v890 = vadd.f32 %v856, %v889
        %891 = vmatmul.bf16.gmra.mxu0 %v702
        %v892 = vpop.f32.mrf.mxu0
        %v893 = vadd.f32 %v859, %v892
        %v894 = vpop.f32.mrf.mxu0
        %v895 = vadd.f32 %v861, %v894
        %896 = vmatmul.bf16.gmra.mxu0 %v704
        %v897 = vpop.f32.mrf.mxu0
        %v898 = vadd.f32 %v864, %v897
        %v899 = vpop.f32.mrf.mxu0
        %v900 = vadd.f32 %v866, %v899
        %901 = vmatmul.bf16.gmra.mxu0 %v706
        %v902 = vpop.f32.mrf.mxu0
        %v903 = vadd.f32 %v869, %v902
        %v904 = vpop.f32.mrf.mxu0
        %v905 = vadd.f32 %v871, %v904
        %906 = vdwg.mxu0
        %907 = vmax.xlane.f32.xlu0 %v883
        %v908 = vpop.xlane.xlu0 %907
        %909 = vmax.xlane.f32.xlu0 %v885
        %v910 = vpop.xlane.xlu0 %909
        %911 = vmax.xlane.f32.xlu0 %v888
        %v912 = vpop.xlane.xlu0 %911
        %913 = vmax.xlane.f32.xlu0 %v890
        %v914 = vpop.xlane.xlu0 %913
        %915 = vmax.xlane.f32.xlu0 %v893
        %v916 = vpop.xlane.xlu0 %915
        %917 = vmax.xlane.f32.xlu0 %v895
        %v918 = vpop.xlane.xlu0 %917
        %919 = vmax.xlane.f32.xlu0 %v898
        %v920 = vpop.xlane.xlu0 %919
        %921 = vmax.xlane.f32.xlu0 %v900
        %v922 = vpop.xlane.xlu0 %921
        %923 = vmax.xlane.f32.xlu0 %v903
        %v924 = vpop.xlane.xlu0 %923
        %925 = vmax.xlane.f32.xlu0 %v905
        %v926 = vpop.xlane.xlu0 %925
        %v927 = vsub.f32 %v883, %v908
        %v928 = vsub.f32 %v885, %v910
        %v929 = vsub.f32 %v888, %v912
        %v930 = vsub.f32 %v890, %v914
        %v931 = vsub.f32 %v893, %v916
        %v932 = vsub.f32 %v895, %v918
        %v933 = vsub.f32 %v898, %v920
        %v934 = vsub.f32 %v900, %v922
        %v935 = vsub.f32 %v903, %v924
        %v936 = vsub.f32 %v905, %v926
        %v937 = vmul.f32 %v927, 1.442695
        %v938 = vpow.pop %v937
        %v939 = vmul.f32 %v928, 1.442695
        %v940 = vpow.pop %v939
        %v941 = vmul.f32 %v929, 1.442695
        %v942 = vpow.pop %v941
        %v943 = vmul.f32 %v930, 1.442695
        %v944 = vpow.pop %v943
        %v945 = vmul.f32 %v931, 1.442695
        %v946 = vpow.pop %v945
        %v947 = vmul.f32 %v932, 1.442695
        %v948 = vpow.pop %v947
        %v949 = vmul.f32 %v933, 1.442695
        %v950 = vpow.pop %v949
        %v951 = vmul.f32 %v934, 1.442695
        %v952 = vpow.pop %v951
        %v953 = vmul.f32 %v935, 1.442695
        %v954 = vpow.pop %v953
        %v955 = vmul.f32 %v936, 1.442695
        %v956 = vpow.pop %v955
        %957 = vadd.xlane.f32.xlu0 %v938
        %v958 = vpop.xlane.xlu0 %957
        %959 = vadd.xlane.f32.xlu0 %v940
        %v960 = vpop.xlane.xlu0 %959
        %961 = vadd.xlane.f32.xlu0 %v942
        %v962 = vpop.xlane.xlu0 %961
        %963 = vadd.xlane.f32.xlu0 %v944
        %v964 = vpop.xlane.xlu0 %963
        %965 = vadd.xlane.f32.xlu0 %v946
        %v966 = vpop.xlane.xlu0 %965
        %967 = vadd.xlane.f32.xlu0 %v948
        %v968 = vpop.xlane.xlu0 %967
        %969 = vadd.xlane.f32.xlu0 %v950
        %v970 = vpop.xlane.xlu0 %969
        %971 = vadd.xlane.f32.xlu0 %v952
        %v972 = vpop.xlane.xlu0 %971
        %973 = vadd.xlane.f32.xlu0 %v954
        %v974 = vpop.xlane.xlu0 %973
        %975 = vadd.xlane.f32.xlu0 %v956
        %v976 = vpop.xlane.xlu0 %975
        %v977 = vlog2.pop %v958
        %v978 = vmul.f32 %v977, 0.6931472
        %v979 = vlog2.pop %v960
        %v980 = vmul.f32 %v979, 0.6931472
        %v981 = vlog2.pop %v962
        %v982 = vmul.f32 %v981, 0.6931472
        %v983 = vlog2.pop %v964
        %v984 = vmul.f32 %v983, 0.6931472
        %v985 = vlog2.pop %v966
        %v986 = vmul.f32 %v985, 0.6931472
        %v987 = vlog2.pop %v968
        %v988 = vmul.f32 %v987, 0.6931472
        %v989 = vlog2.pop %v970
        %v990 = vmul.f32 %v989, 0.6931472
        %v991 = vlog2.pop %v972
        %v992 = vmul.f32 %v991, 0.6931472
        %v993 = vlog2.pop %v974
        %v994 = vmul.f32 %v993, 0.6931472
        %v995 = vlog2.pop %v976
        %v996 = vmul.f32 %v995, 0.6931472
        %v997 = vsub.f32 %v927, %v978
        %v998 = vsub.f32 %v928, %v980
        %v999 = vsub.f32 %v929, %v982
        %v1000 = vsub.f32 %v930, %v984
        %v1001 = vsub.f32 %v931, %v986
        %v1002 = vsub.f32 %v932, %v988
        %v1003 = vsub.f32 %v933, %v990
        %v1004 = vsub.f32 %v934, %v992
        %v1005 = vsub.f32 %v935, %v994
        %v1006 = vsub.f32 %v936, %v996
        %1007 = vst [vmem:[%s301] sm:$0xff] %v997
        %1008 = vst [vmem:[%s301 + $0x8] sm:$0xff] %v998
        %1009 = vst [vmem:[%s301 + $0x10] sm:$0xff] %v999
        %1010 = vst [vmem:[%s301 + $0x18] sm:$0xff] %v1000
        %1011 = vst [vmem:[%s301 + $0x20] sm:$0xff] %v1001
        %1012 = vst [vmem:[%s301 + $0x28] sm:$0xff] %v1002
        %1013 = vst [vmem:[%s301 + $0x30] sm:$0xff] %v1003
        %1014 = vst [vmem:[%s301 + $0x38] sm:$0xff] %v1004
        %1015 = vst [vmem:[%s301 + $0x40] sm:$0xff] %v1005
        %1016 = vst [vmem:[%s301 + $0x48] sm:$0xff] %v1006
        %s1017 = sand.u32 %s142, 1
        %s1018 = scalar_lea.sflag [#allocation4], %s1017
        %s1019 = sand.u32 %s142, 1
        %s1020 = smul.addr %s1019, 80
        %s1021 = scalar_lea.vmem [#allocation10], %s1020
        // Predicated region
        $region57: #{tpu_custom_call.1} parent=39 // pred_check
          %p1022 = pneg %p152
        $region58: #{tpu_custom_call.1} parent=39 // pred_check_branch
          %1024 = sbr.rel (%p1022) target = $region60
        $region59: #{tpu_custom_call.1} parent=39 // pred_region
          %s1025 = smul.u32 10, %s24
          %s1026 = ssub.s32 38, %s1025
          %p1027 = scmp.lt.s32.totalorder %s1026, 10
          %s1028 = scalar_select %p1027, %s1026, 10
          %s1029 = smul.u32 8, %s1028
          %s1030 = ssub.s32 80, %s1029
          %s1031 = sshll.u32 %s1030, 4
          %1032 = vsyncadd %s1018, %s1031
          %p1033 = scmp.ne.s32.totalorder 0, %s1029
          %s1034 = smul.addr %s1025, 8
          %s1035 = scalar_lea.hbm %s5, %s1034
          %s1036 = smul.u32 8, %s1028
          %s1037 = sshll.u32 %s1021, 4
          %s1038 = int_to_ptr.vmem [resolvable:$true] %s1037
          %s1039 = sshll.u32 %s1035, 4
          %s1040 = int_to_ptr.hbm [resolvable:$true] %s1039
          %s1041 = sshll.u32 %s1036, 4
          %1045 = dma.vmem_to_hbm [thread:$0]  (%p1033), %s1038, %s1041, %s1040, %s1018, 128, 128, 8
        $region60: #{tpu_custom_call.1} parent=39 // pred_fallthru
          _
      $region40: #{tpu_custom_call.1} parent=5 // pred_fallthru
        _
      %p1046 = scmp.le.s32.totalorder 2, %s19
      // Predicated region
      $region61: #{tpu_custom_call.1} parent=5 // pred_check
        %p1047 = pneg %p1046
      $region62: #{tpu_custom_call.1} parent=5 // pred_check_branch
        %1049 = sbr.rel (%p1047) target = $region64
      $region63: #{tpu_custom_call.1} parent=5 // pred_region
        %s1050 = ssub.s32 %s19, 2
        // Predicated region
        $region65: #{tpu_custom_call.1} parent=63 // pred_check
          %p1051 = pneg %p158
        $region66: #{tpu_custom_call.1} parent=63 // pred_check_branch
          %1053 = sbr.rel (%p1051) target = $region68
        $region67: #{tpu_custom_call.1} parent=63 // pred_region
          %s1054 = sand.u32 %s143, 1
          %s1055 = scalar_lea.sflag [#allocation4], %s1054
          %s1056 = sand.u32 %s143, 1
          %s1057 = smul.addr %s1056, 80
          %s1058 = scalar_lea.vmem [#allocation10], %s1057
          %1060 = dma.done %s1055, 1280
        $region68: #{tpu_custom_call.1} parent=63 // pred_fallthru
          _
      $region64: #{tpu_custom_call.1} parent=5 // pred_fallthru
        _
    $region6: #{tpu_custom_call.1} parent=1 // loop_footer
      %s23 = sadd.s32 1, %s19
    $region7: #{tpu_custom_call.1} parent=1 // loop_footer_branch
      %18 = sbr.rel target = $region3
    $region8: #{tpu_custom_call.1} parent=1 // loop_exit
      _
    %1061 = vsyncpa [#allocation3], 1
    %s1062 = scalar_lea.sflag [#allocation3], 1
    %1063 = vsyncpa %s1062, 1
    %1064 = vsyncpa [#allocation6], 1
    %1065 = vsyncpa [#allocation9], 1
    %1066 = vsyncpa [#allocation4], 1
    %s1067 = scalar_lea.sflag [#allocation4], 1
    %1068 = vsyncpa %s1067, 1

</llo_original>
